<compile_context>
chip_gen: v6e
topology: v6e:2x2x1
jax: 0.10.0
libtpu: 0.0.40
codegen_flags: <defaults>
</compile_context>

<pallas_src>
import functools

import jax
import jax.numpy as jnp
from jax import lax
from jax.experimental import pallas as pl
from jax.experimental.pallas import tpu as pltpu

SIZE = 32          # LayerNorm `size` (hidden dim) of the PyTorch module
PACK = 4           # logical rows folded into the 128-lane axis (4 * 32 = 128)
DROPOUT_P = 0.1    # dropout prob (training-mode semantics)
LN_EPS = 1e-5      # nn.LayerNorm default eps


def _hash_u32(x):
    """Stateless 32-bit integer mixer (splitmix64/murmur finalizer style)."""
    x = x ^ (x >> jnp.uint32(16))
    x = x * jnp.uint32(0x7FEB352D)
    x = x ^ (x >> jnp.uint32(15))
    x = x * jnp.uint32(0x846CA68B)
    x = x ^ (x >> jnp.uint32(16))
    return x


def _sublayer_connection_kernel(seed_ref, x_ref, s_ref, w_ref, b_ref, o_ref,
                                *, dropout_p, tm):
    # x tile: (tm, 128) = (tm, PACK*SIZE), lane-dense (4 logical rows / vreg row).
    x = x_ref[...].astype(jnp.float32)

    # ---- segmented LayerNorm over each 32-lane group (MXU reduction) -------
    # s_ref is block-diag(ones(32,32)/32): broadcasts each group's mean over
    # all lanes of that group, keeping everything at full (tm, 128) width.
    s = s_ref[...]
    mean = jnp.dot(x, s, preferred_element_type=jnp.float32)
    centered = x - mean
    var = jnp.dot(centered * centered, s, preferred_element_type=jnp.float32)
    normed = centered * lax.rsqrt(var + LN_EPS)

    # ---- sublayer: Linear(size, size), gamma/beta already folded into W/b --
    # w_ref is block-diag of (diag(gamma) @ W), b_ref is tile of (beta @ W + b).
    y = jnp.dot(normed, w_ref[...], preferred_element_type=jnp.float32) + b_ref[...]

    # ---- dropout (training mode), stateless counter-based PRNG --------------
    # NOTE: deterministic given `seed`; random stream differs from torch's RNG.
    if dropout_p >= 1.0:
        y = jnp.zeros_like(y)
    elif dropout_p > 0.0:
        row = lax.broadcasted_iota(jnp.uint32, y.shape, 0)
        col = lax.broadcasted_iota(jnp.uint32, y.shape, 1)
        base = (pl.program_id(0) * tm).astype(jnp.uint32)
        gid = (base + row) * jnp.uint32(y.shape[-1]) + col   # global element id
        mixed = gid ^ _hash_u32(seed_ref[0].astype(jnp.uint32))
        bits = _hash_u32(mixed)
        thr = min(int(round(dropout_p * (2 ** 32))), 2 ** 32 - 1)
        keep = bits >= jnp.uint32(thr)
        y = jnp.where(keep, y * (1.0 / (1.0 - dropout_p)), 0.0)

    # ---- residual ------------------------------------------------------------
    o_ref[...] = (x + y).astype(o_ref.dtype)


def sublayer_connection(x2d, gamma, beta, w, b, seed, *,
                        dropout_p=DROPOUT_P, tm=None):
    """x2d: (N, SIZE) float32. Returns x + dropout(LayerNorm(x) @ w + b)."""
    n, d = x2d.shape
    assert d == SIZE
    assert n % PACK == 0, "N must be a multiple of 4 for lane packing"
    # TODO(synk): pad N to a multiple of PACK for arbitrary row counts.

    n_packed = n // PACK
    if tm is None:
        tm = n_packed if n_packed <= 1024 else 1024
    assert n_packed % tm == 0

    f32 = jnp.float32
    gamma = gamma.reshape(d).astype(f32)
    beta = beta.reshape(d).astype(f32)
    w = w.astype(f32)
    b = b.reshape(d).astype(f32)

    # Fold LayerNorm affine into the linear layer, then block-diagonalize so
    # the matmul runs at full 128-lane width on the packed layout.
    w_fold = gamma[:, None] * w                              # diag(gamma) @ W
    b_fold = beta @ w + b                                    # beta @ W + b
    w_block = jnp.kron(jnp.eye(PACK, dtype=f32), w_fold)     # (128, 128)
    b_tiled = jnp.tile(b_fold, PACK).reshape(1, PACK * d)    # (1, 128)
    s_mean = jnp.kron(jnp.eye(PACK, dtype=f32),
                      jnp.ones((d, d), f32) / d)             # (128, 128)

    x_packed = x2d.reshape(n_packed, PACK * d)               # lane-dense view

    kernel = functools.partial(_sublayer_connection_kernel,
                               dropout_p=float(dropout_p), tm=tm)

    grid_spec = pltpu.PrefetchScalarGridSpec(
        num_scalar_prefetch=1,                # seed -> SMEM
        grid=(n_packed // tm,),
        in_specs=[
            pl.BlockSpec((tm, PACK * d), lambda i, s: (i, 0)),   # x tile
            pl.BlockSpec((PACK * d, PACK * d), lambda i, s: (0, 0)),  # seg-mean mat
            pl.BlockSpec((PACK * d, PACK * d), lambda i, s: (0, 0)),  # W block-diag
            pl.BlockSpec((1, PACK * d), lambda i, s: (0, 0)),         # bias
        ],
        out_specs=pl.BlockSpec((tm, PACK * d), lambda i, s: (i, 0)),
    )

    out_packed = pl.pallas_call(
        kernel,
        out_shape=jax.ShapeDtypeStruct((n_packed, PACK * d), x2d.dtype),
        grid_spec=grid_spec,
        compiler_params=pltpu.CompilerParams(
            # Grid steps are fully independent (dropout seed is element-index
            # based), so let v7x split them across both TensorCores.
            dimension_semantics=("parallel",)),
    )(seed, x_packed, s_mean, w_block, b_tiled)

    return out_packed.reshape(n, d)


if __name__ == "__main__":
    key = jax.random.PRNGKey(0)
    k_x, k_w, k_b = jax.random.split(key, 3)

    B, S, D = 2, 8, SIZE            # batch=2, seq=8, hidden=32
    x = jax.random.normal(k_x, (B, S, D), dtype=jnp.float32)

    # LayerNorm params (PyTorch defaults: weight=1, bias=0)
    gamma = jnp.ones((D,), dtype=jnp.float32)
    beta = jnp.zeros((D,), dtype=jnp.float32)

    # Deterministic synthetic sublayer = Linear(D, D)
    w = jax.random.normal(k_w, (D, D), dtype=jnp.float32) * (1.0 / jnp.sqrt(D))
    bias = jax.random.normal(k_b, (D,), dtype=jnp.float32) * 0.02

    seed = jnp.array([1234], dtype=jnp.int32)

    x2d = x.reshape(B * S, D)       # layout: [N, D], N = B*S

    # Training-mode forward (with dropout).
    out = sublayer_connection(x2d, gamma, beta, w, bias, seed)
    jax.block_until_ready(out)
    out3d = out.reshape(B, S, D)

    # Correctness check of the deterministic path (dropout_p=0) vs pure JAX.
    out_nodrop = sublayer_connection(x2d, gamma, beta, w, bias, seed,
                                     dropout_p=0.0)
    mean = jnp.mean(x2d, axis=-1, keepdims=True)
    var = jnp.mean((x2d - mean) ** 2, axis=-1, keepdims=True)
    normed = (x2d - mean) / jnp.sqrt(var + LN_EPS) * gamma + beta
    ref = x2d + (normed @ w + bias)
    assert jnp.allclose(out_nodrop, ref, atol=1e-4, rtol=1e-4), "mismatch vs ref"

    # Dropout sanity: every element is either the pure residual (dropped) or
    # residual + scaled sublayer output.
    scale = 1.0 / (1.0 - DROPOUT_P)
    alt = x2d + (ref - x2d) * scale
    close_drop = jnp.isclose(out, x2d, atol=1e-4, rtol=1e-4)
    close_keep = jnp.isclose(out, alt, atol=1e-4, rtol=1e-4)
    assert bool(jnp.all(close_drop | close_keep)), "dropout structure mismatch"

    print("KERNEL_OK")
</pallas_src>

<mosaic_0001>
module attributes {stable_mosaic.version = 11 : i64} {
  func.func @_sublayer_connection_kernel(%arg0: i32, %arg1: memref<1xi32, #tpu.memory_space<smem>>, %arg2: memref<4x128xf32, #tpu.memory_space<vmem>>, %arg3: memref<128x128xf32, #tpu.memory_space<vmem>>, %arg4: memref<128x128xf32, #tpu.memory_space<vmem>>, %arg5: memref<1x128xf32, #tpu.memory_space<vmem>>, %arg6: memref<4x128xf32, #tpu.memory_space<vmem>>) attributes {dimension_semantics = [#tpu.dimension_semantics<parallel>], iteration_bounds = array<i64: 1>, scalar_prefetch = 1 : i64, scratch_operands = 0 : i64, tpu.core_type = #tpu.core_type<tc>, window_params = [{transform_indices = @transform_0, window_bounds = array<i64: 4, 128>}, {pipeline_mode = #tpu.pipeline_mode<synchronous>, transform_indices = @transform_1, window_bounds = array<i64: 128, 128>}, {pipeline_mode = #tpu.pipeline_mode<synchronous>, transform_indices = @transform_2, window_bounds = array<i64: 128, 128>}, {pipeline_mode = #tpu.pipeline_mode<synchronous>, transform_indices = @transform_3, window_bounds = array<i64: 1, 128>}, {transform_indices = @transform_4, window_bounds = array<i64: 4, 128>}]} {
    %c0 = arith.constant 0 : index
    %c0_0 = arith.constant 0 : index
    %0 = vector.load %arg2[%c0, %c0_0] : memref<4x128xf32, #tpu.memory_space<vmem>>, vector<4x128xf32>
    %c0_1 = arith.constant 0 : index
    %c0_2 = arith.constant 0 : index
    %1 = vector.load %arg3[%c0_1, %c0_2] : memref<128x128xf32, #tpu.memory_space<vmem>>, vector<128x128xf32>
    %cst = arith.constant dense<0.000000e+00> : vector<4x128xf32>
    %2 = tpu.matmul %0, %1, %cst {dimension_numbers = #tpu.dot_dimension_numbers<[1], [0], [0], [1], [0, 0, 1, 1], [], []>} : vector<4x128xf32>, vector<128x128xf32>, vector<4x128xf32> -> vector<4x128xf32>
    %3 = arith.subf %0, %2 : vector<4x128xf32>
    %4 = arith.mulf %3, %3 : vector<4x128xf32>
    %cst_3 = arith.constant dense<0.000000e+00> : vector<4x128xf32>
    %5 = tpu.matmul %4, %1, %cst_3 {dimension_numbers = #tpu.dot_dimension_numbers<[1], [0], [0], [1], [0, 0, 1, 1], [], []>} : vector<4x128xf32>, vector<128x128xf32>, vector<4x128xf32> -> vector<4x128xf32>
    %cst_4 = arith.constant 9.99999974E-6 : f32
    %6 = vector.broadcast %cst_4 : f32 to vector<4x128xf32>
    %7 = arith.addf %5, %6 : vector<4x128xf32>
    %8 = math.rsqrt %7 : vector<4x128xf32>
    %9 = arith.mulf %3, %8 : vector<4x128xf32>
    %c0_5 = arith.constant 0 : index
    %c0_6 = arith.constant 0 : index
    %10 = vector.load %arg4[%c0_5, %c0_6] : memref<128x128xf32, #tpu.memory_space<vmem>>, vector<128x128xf32>
    %cst_7 = arith.constant dense<0.000000e+00> : vector<4x128xf32>
    %11 = tpu.matmul %9, %10, %cst_7 {dimension_numbers = #tpu.dot_dimension_numbers<[1], [0], [0], [1], [0, 0, 1, 1], [], []>} : vector<4x128xf32>, vector<128x128xf32>, vector<4x128xf32> -> vector<4x128xf32>
    %c0_8 = arith.constant 0 : index
    %c0_9 = arith.constant 0 : index
    %12 = vector.load %arg5[%c0_8, %c0_9] : memref<1x128xf32, #tpu.memory_space<vmem>>, vector<1x128xf32>
    %13 = vector.broadcast %12 : vector<1x128xf32> to vector<4x128xf32>
    %14 = arith.addf %11, %13 : vector<4x128xf32>
    %15 = tpu.iota {dimensions = array<i32: 0>} : vector<4x128xi32>
    %16 = tpu.iota {dimensions = array<i32: 1>} : vector<4x128xi32>
    %c4_i32 = arith.constant 4 : i32
    %17 = arith.muli %arg0, %c4_i32 : i32
    %18 = vector.broadcast %17 : i32 to vector<4x128xi32>
    %19 = arith.addi %18, %15 : vector<4x128xi32>
    %c128_i32 = arith.constant 128 : i32
    %20 = vector.broadcast %c128_i32 : i32 to vector<4x128xi32>
    %21 = arith.muli %19, %20 : vector<4x128xi32>
    %22 = arith.addi %21, %16 : vector<4x128xi32>
    %c0_10 = arith.constant 0 : index
    %23 = memref.load %arg1[%c0_10] : memref<1xi32, #tpu.memory_space<smem>>
    %c16_i32 = arith.constant 16 : i32
    %24 = arith.shrui %23, %c16_i32 : i32
    %25 = arith.xori %23, %24 : i32
    %c2146121005_i32 = arith.constant 2146121005 : i32
    %26 = arith.muli %25, %c2146121005_i32 : i32
    %c15_i32 = arith.constant 15 : i32
    %27 = arith.shrui %26, %c15_i32 : i32
    %28 = arith.xori %26, %27 : i32
    %c-2073254261_i32 = arith.constant -2073254261 : i32
    %29 = arith.muli %28, %c-2073254261_i32 : i32
    %c16_i32_11 = arith.constant 16 : i32
    %30 = arith.shrui %29, %c16_i32_11 : i32
    %31 = arith.xori %29, %30 : i32
    %32 = vector.broadcast %31 : i32 to vector<4x128xi32>
    %33 = arith.xori %22, %32 : vector<4x128xi32>
    %c16_i32_12 = arith.constant 16 : i32
    %34 = vector.broadcast %c16_i32_12 : i32 to vector<4x128xi32>
    %35 = arith.shrui %33, %34 : vector<4x128xi32>
    %36 = arith.xori %33, %35 : vector<4x128xi32>
    %c2146121005_i32_13 = arith.constant 2146121005 : i32
    %37 = vector.broadcast %c2146121005_i32_13 : i32 to vector<4x128xi32>
    %38 = arith.muli %36, %37 : vector<4x128xi32>
    %c15_i32_14 = arith.constant 15 : i32
    %39 = vector.broadcast %c15_i32_14 : i32 to vector<4x128xi32>
    %40 = arith.shrui %38, %39 : vector<4x128xi32>
    %41 = arith.xori %38, %40 : vector<4x128xi32>
    %c-2073254261_i32_15 = arith.constant -2073254261 : i32
    %42 = vector.broadcast %c-2073254261_i32_15 : i32 to vector<4x128xi32>
    %43 = arith.muli %41, %42 : vector<4x128xi32>
    %c16_i32_16 = arith.constant 16 : i32
    %44 = vector.broadcast %c16_i32_16 : i32 to vector<4x128xi32>
    %45 = arith.shrui %43, %44 : vector<4x128xi32>
    %46 = arith.xori %43, %45 : vector<4x128xi32>
    %c429496730_i32 = arith.constant 429496730 : i32
    %47 = vector.broadcast %c429496730_i32 : i32 to vector<4x128xi32>
    %48 = arith.cmpi uge, %46, %47 : vector<4x128xi32>
    %cst_17 = arith.constant 1.11111116 : f32
    %49 = vector.broadcast %cst_17 : f32 to vector<4x128xf32>
    %50 = arith.mulf %14, %49 : vector<4x128xf32>
    %cst_18 = arith.constant 0.000000e+00 : f32
    %51 = vector.broadcast %cst_18 : f32 to vector<4x128xf32>
    %52 = arith.select %48, %50, %51 : vector<4x128xi1>, vector<4x128xf32>
    %53 = arith.addf %0, %52 : vector<4x128xf32>
    %c0_19 = arith.constant 0 : index
    %c0_20 = arith.constant 0 : index
    %54 = vector.load %arg6[%c0_19, %c0_20] : memref<4x128xf32, #tpu.memory_space<vmem>>, vector<4x128xf32>
    tpu.vector_store %arg6[%c0_19, %c0_20], %53 {strides = array<i32>} : memref<4x128xf32, #tpu.memory_space<vmem>>, vector<4x128xf32>,
    return
  }
  func.func @transform_0(%arg0: i32, %arg1: memref<1xi32, #tpu.memory_space<smem>>) -> (i32, i32) {
    %c0_i32 = arith.constant 0 : i32
    %c0_i32_0 = arith.constant 0 : i32
    return %arg0, %c0_i32 : i32, i32
  }
  func.func @transform_1(%arg0: i32, %arg1: memref<1xi32, #tpu.memory_space<smem>>) -> (i32, i32) {
    %c0_i32 = arith.constant 0 : i32
    %c0_i32_0 = arith.constant 0 : i32
    %c0_i32_1 = arith.constant 0 : i32
    return %c0_i32, %c0_i32_0 : i32, i32
  }
  func.func @transform_2(%arg0: i32, %arg1: memref<1xi32, #tpu.memory_space<smem>>) -> (i32, i32) {
    %c0_i32 = arith.constant 0 : i32
    %c0_i32_0 = arith.constant 0 : i32
    %c0_i32_1 = arith.constant 0 : i32
    return %c0_i32, %c0_i32_0 : i32, i32
  }
  func.func @transform_3(%arg0: i32, %arg1: memref<1xi32, #tpu.memory_space<smem>>) -> (i32, i32) {
    %c0_i32 = arith.constant 0 : i32
    %c0_i32_0 = arith.constant 0 : i32
    %c0_i32_1 = arith.constant 0 : i32
    return %c0_i32, %c0_i32_0 : i32, i32
  }
  func.func @transform_4(%arg0: i32, %arg1: memref<1xi32, #tpu.memory_space<smem>>) -> (i32, i32) {
    %c0_i32 = arith.constant 0 : i32
    %c0_i32_0 = arith.constant 0 : i32
    return %arg0, %c0_i32 : i32, i32
  }
}

</mosaic_0001>

<llo_original>
// kernel: tpu_custom_call.1
$region0: #{tpu_custom_call.1}
  #allocation0 [shape = 'u32[]', space=smem, size = 0x4, offset = 0x4, fixed_abs, tag = 'smem constant byte address 0x4 - core index']
  #allocation1 [shape = 'u32[144,128]{1,0:T(1,128)}', space=vmem, size = 0x12000, scoped, tag = 'internal scratch']
  #allocation2 [shape = 's32[1]{0}', space=sflag, size = 0x4, scoped, tag = 'scoped memory for tpu_custom_call.1']
  #allocation3 [shape = 's32[1]{0:T(128)S(6)}', space=smem, size = 0x200, scoped, tag = 'prefetched SMEM operand 0']
  %s0 = inlined_call_operand.<no memory space> [shape: s32[1], index: 0, kind: input, shape index: {}]
  %s1 = inlined_call_operand.hbm [shape: f32[4,128], index: 1, kind: input, shape index: {}]
  %s2 = inlined_call_operand.hbm [shape: f32[128,128], index: 2, kind: input, shape index: {}]
  %s3 = inlined_call_operand.hbm [shape: f32[128,128], index: 3, kind: input, shape index: {}]
  %s4 = inlined_call_operand.vmem [shape: f32[1,128], index: 4, kind: input, shape index: {}]
  %s5 = inlined_call_operand.hbm [shape: f32[4,128], index: 5, kind: output, shape index: {}]
  %s6 = sld [smem:[#allocation0]]
  $region38: #{tpu_custom_call.1} parent=0
    _
  %s8 = ssub.s32 1, %s6
  %s9 = scalar_select 0, %s8, %s6
  %10 = sst [smem:[#allocation3]] %s0
  $region1: #{tpu_custom_call.1} parent=0
    #allocation4 [shape = 'u8[2048]{0}', space=vmem, size = 0x800, scoped, tag = 'input window, operand 1, single buffered']
    #allocation5 [shape = 's32[1]{0}', space=sflag, size = 0x4, scoped, tag = 'scoped memory for tpu_custom_call.1']
    #allocation6 [shape = 's32[1]{0}', space=sflag, size = 0x4, scoped, tag = 'scoped memory for tpu_custom_call.1']
    #allocation7 [shape = 'u8[65536]{0}', space=vmem, size = 0x10000, scoped, tag = 'input window, operand 2, single buffered']
    #allocation8 [shape = 's32[1]{0}', space=sflag, size = 0x4, scoped, tag = 'scoped memory for tpu_custom_call.1']
    #allocation9 [shape = 'u8[65536]{0}', space=vmem, size = 0x10000, scoped, tag = 'input window, operand 3, single buffered']
    #allocation10 [shape = 'u8[2048]{0}', space=vmem, size = 0x800, scoped, tag = 'output window, operand 0, single buffered']
    %11 = vsyncpa [#allocation5], 0
    %12 = vsyncpa [#allocation8], 0
    %13 = vsyncpa [#allocation6], 0
    // Predicated region
    $region2: #{tpu_custom_call.1} parent=1 // pred_check
      _
    $region3: #{tpu_custom_call.1} parent=1 // pred_check_branch
      %15 = sbr.rel (0) target = $region5
    $region4: #{tpu_custom_call.1} parent=1 // pred_region
      %s17 = ssub.s32 64, 64
      %18 = vsyncadd [#allocation5], %s17
      %s20 = sshll.u32 [#allocation4], 4
      %s21 = int_to_ptr.vmem [resolvable:$true] %s20
      %23 = dma.hbm_to_vmem [thread:$0]  %s1, 64, %s21, [#allocation5]
    $region5: #{tpu_custom_call.1} parent=1 // pred_fallthru
      _
    // Predicated region
    $region6: #{tpu_custom_call.1} parent=1 // pred_check
      _
    $region7: #{tpu_custom_call.1} parent=1 // pred_check_branch
      %25 = sbr.rel (0) target = $region9
    $region8: #{tpu_custom_call.1} parent=1 // pred_region
      %s27 = ssub.s32 2048, 2048
      %28 = vsyncadd [#allocation8], %s27
      %s29 = sshll.u32 [#allocation7], 4
      %s30 = int_to_ptr.vmem [resolvable:$true] %s29
      %35 = dma.hbm_to_vmem [thread:$0]  %s2, 2048, %s30, [#allocation8], 128, 128, 8
    $region9: #{tpu_custom_call.1} parent=1 // pred_fallthru
      _
    // Predicated region
    $region10: #{tpu_custom_call.1} parent=1 // pred_check
      _
    $region11: #{tpu_custom_call.1} parent=1 // pred_check_branch
      %37 = sbr.rel (0) target = $region13
    $region12: #{tpu_custom_call.1} parent=1 // pred_region
      %s39 = ssub.s32 2048, 2048
      %40 = vsyncadd [#allocation8], %s39
      %s41 = sshll.u32 [#allocation9], 4
      %s42 = int_to_ptr.vmem [resolvable:$true] %s41
      %47 = dma.hbm_to_vmem [thread:$0]  %s3, 2048, %s42, [#allocation8], 128, 128, 8
    $region13: #{tpu_custom_call.1} parent=1 // pred_fallthru
      _
    // Predicated region
    $region14: #{tpu_custom_call.1} parent=1 // pred_check
      _
    $region15: #{tpu_custom_call.1} parent=1 // pred_check_branch
      %49 = sbr.rel (0) target = $region17
    $region16: #{tpu_custom_call.1} parent=1 // pred_region
      _
    $region17: #{tpu_custom_call.1} parent=1 // pred_fallthru
      _
    // Predicated region
    $region18: #{tpu_custom_call.1} parent=1 // pred_check
      _
    $region19: #{tpu_custom_call.1} parent=1 // pred_check_branch
      %51 = sbr.rel (0) target = $region21
    $region20: #{tpu_custom_call.1} parent=1 // pred_region
      %52 = dma.done [#allocation5], 64
    $region21: #{tpu_custom_call.1} parent=1 // pred_fallthru
      _
    // Predicated region
    $region22: #{tpu_custom_call.1} parent=1 // pred_check
      _
    $region23: #{tpu_custom_call.1} parent=1 // pred_check_branch
      %54 = sbr.rel (0) target = $region25
    $region24: #{tpu_custom_call.1} parent=1 // pred_region
      %55 = dma.done [#allocation8], 2048
    $region25: #{tpu_custom_call.1} parent=1 // pred_fallthru
      _
    // Predicated region
    $region26: #{tpu_custom_call.1} parent=1 // pred_check
      _
    $region27: #{tpu_custom_call.1} parent=1 // pred_check_branch
      %57 = sbr.rel (0) target = $region29
    $region28: #{tpu_custom_call.1} parent=1 // pred_region
      %58 = dma.done [#allocation8], 2048
    $region29: #{tpu_custom_call.1} parent=1 // pred_fallthru
      _
    %v59 = vld [vmem:[#allocation4] sm:$0xf]
    %v60 = vld [vmem:[#allocation7] sm:$0xff]
    %v61 = vld [vmem:[#allocation7 + $0x8] sm:$0xff]
    %v62 = vld [vmem:[#allocation7 + $0x10] sm:$0xff]
    %v63 = vld [vmem:[#allocation7 + $0x18] sm:$0xff]
    %v64 = vld [vmem:[#allocation7 + $0x20] sm:$0xff]
    %v65 = vld [vmem:[#allocation7 + $0x28] sm:$0xff]
    %v66 = vld [vmem:[#allocation7 + $0x30] sm:$0xff]
    %v67 = vld [vmem:[#allocation7 + $0x38] sm:$0xff]
    %v68 = vld [vmem:[#allocation7 + $0x40] sm:$0xff]
    %v69 = vld [vmem:[#allocation7 + $0x48] sm:$0xff]
    %v70 = vld [vmem:[#allocation7 + $0x50] sm:$0xff]
    %v71 = vld [vmem:[#allocation7 + $0x58] sm:$0xff]
    %v72 = vld [vmem:[#allocation7 + $0x60] sm:$0xff]
    %v73 = vld [vmem:[#allocation7 + $0x68] sm:$0xff]
    %v74 = vld [vmem:[#allocation7 + $0x70] sm:$0xff]
    %v75 = vld [vmem:[#allocation7 + $0x78] sm:$0xff]
    %76 = vmatprep.subr.mxu0 0.0
    %77 = vmatpush1.msra.mxu0 %v75
    %78 = vmatprep.subr.mxu0 0.0
    %79 = vmatpush1.msra.mxu0 %v74
    %80 = vmatprep.subr.mxu0 0.0
    %81 = vmatpush1.msra.mxu0 %v73
    %82 = vmatprep.subr.mxu0 0.0
    %83 = vmatpush1.msra.mxu0 %v72
    %84 = vmatprep.subr.mxu0 0.0
    %85 = vmatpush1.msra.mxu0 %v71
    %86 = vmatprep.subr.mxu0 0.0
    %87 = vmatpush1.msra.mxu0 %v70
    %88 = vmatprep.subr.mxu0 0.0
    %89 = vmatpush1.msra.mxu0 %v69
    %90 = vmatprep.subr.mxu0 0.0
    %91 = vmatpush1.msra.mxu0 %v68
    %92 = vmatprep.subr.mxu0 0.0
    %93 = vmatpush1.msra.mxu0 %v67
    %94 = vmatprep.subr.mxu0 0.0
    %95 = vmatpush1.msra.mxu0 %v66
    %96 = vmatprep.subr.mxu0 0.0
    %97 = vmatpush1.msra.mxu0 %v65
    %98 = vmatprep.subr.mxu0 0.0
    %99 = vmatpush1.msra.mxu0 %v64
    %100 = vmatprep.subr.mxu0 0.0
    %101 = vmatpush1.msra.mxu0 %v63
    %102 = vmatprep.subr.mxu0 0.0
    %103 = vmatpush1.msra.mxu0 %v62
    %104 = vmatprep.subr.mxu0 0.0
    %105 = vmatpush1.msra.mxu0 %v61
    %106 = vmatprep.subr.mxu0 0.0
    %107 = vmatpush1.msra.mxu0 %v60
    %108 = vmatprep.subr.mxu0 0.0
    %109 = vmatpush2.msra.mxu0 0.0
    %110 = vmatprep.subr.mxu0 0.0
    %111 = vmatpush2.msra.mxu0 0.0
    %112 = vmatprep.subr.mxu0 0.0
    %113 = vmatpush2.msra.mxu0 0.0
    %114 = vmatprep.subr.mxu0 0.0
    %115 = vmatpush2.msra.mxu0 0.0
    %116 = vmatprep.subr.mxu0 0.0
    %117 = vmatpush2.msra.mxu0 0.0
    %118 = vmatprep.subr.mxu0 0.0
    %119 = vmatpush2.msra.mxu0 0.0
    %120 = vmatprep.subr.mxu0 0.0
    %121 = vmatpush2.msra.mxu0 0.0
    %122 = vmatprep.subr.mxu0 0.0
    %123 = vmatpush2.msra.mxu0 0.0
    %124 = vmatprep.subr.mxu0 0.0
    %125 = vmatpush2.msra.mxu0 0.0
    %126 = vmatprep.subr.mxu0 0.0
    %127 = vmatpush2.msra.mxu0 0.0
    %128 = vmatprep.subr.mxu0 0.0
    %129 = vmatpush2.msra.mxu0 0.0
    %130 = vmatprep.subr.mxu0 0.0
    %131 = vmatpush2.msra.mxu0 0.0
    %132 = vmatprep.subr.mxu0 0.0
    %133 = vmatpush2.msra.mxu0 0.0
    %134 = vmatprep.subr.mxu0 0.0
    %135 = vmatpush2.msra.mxu0 0.0
    %136 = vmatprep.subr.mxu0 0.0
    %137 = vmatpush2.msra.mxu0 0.0
    %138 = vmatprep.subr.mxu0 0.0
    %139 = vmatpush2.msra.mxu0 0.0
    %140 = vmatprep.mubr.f32.mxu0 0.0
    %141 = vmatmul.mubr.f32.gmra.mxu0 %v59
    %v142 = vpop.f32.mrf.mxu0
    %v143 = vadd.f32 0.0, %v142
    %v144 = vpop.f32.mrf.mxu0
    %145 = vdwg.mxu0
    %v146 = vsub.f32 %v59, %v143
    %v147 = vmul.f32 %v146, %v146
    %148 = vmatprep.subr.mxu0 0.0
    %149 = vmatpush1.msra.mxu0 %v75
    %150 = vmatprep.subr.mxu0 0.0
    %151 = vmatpush1.msra.mxu0 %v74
    %152 = vmatprep.subr.mxu0 0.0
    %153 = vmatpush1.msra.mxu0 %v73
    %154 = vmatprep.subr.mxu0 0.0
    %155 = vmatpush1.msra.mxu0 %v72
    %156 = vmatprep.subr.mxu0 0.0
    %157 = vmatpush1.msra.mxu0 %v71
    %158 = vmatprep.subr.mxu0 0.0
    %159 = vmatpush1.msra.mxu0 %v70
    %160 = vmatprep.subr.mxu0 0.0
    %161 = vmatpush1.msra.mxu0 %v69
    %162 = vmatprep.subr.mxu0 0.0
    %163 = vmatpush1.msra.mxu0 %v68
    %164 = vmatprep.subr.mxu0 0.0
    %165 = vmatpush1.msra.mxu0 %v67
    %166 = vmatprep.subr.mxu0 0.0
    %167 = vmatpush1.msra.mxu0 %v66
    %168 = vmatprep.subr.mxu0 0.0
    %169 = vmatpush1.msra.mxu0 %v65
    %170 = vmatprep.subr.mxu0 0.0
    %171 = vmatpush1.msra.mxu0 %v64
    %172 = vmatprep.subr.mxu0 0.0
    %173 = vmatpush1.msra.mxu0 %v63
    %174 = vmatprep.subr.mxu0 0.0
    %175 = vmatpush1.msra.mxu0 %v62
    %176 = vmatprep.subr.mxu0 0.0
    %177 = vmatpush1.msra.mxu0 %v61
    %178 = vmatprep.subr.mxu0 0.0
    %179 = vmatpush1.msra.mxu0 %v60
    %180 = vmatprep.subr.mxu0 0.0
    %181 = vmatpush2.msra.mxu0 0.0
    %182 = vmatprep.subr.mxu0 0.0
    %183 = vmatpush2.msra.mxu0 0.0
    %184 = vmatprep.subr.mxu0 0.0
    %185 = vmatpush2.msra.mxu0 0.0
    %186 = vmatprep.subr.mxu0 0.0
    %187 = vmatpush2.msra.mxu0 0.0
    %188 = vmatprep.subr.mxu0 0.0
    %189 = vmatpush2.msra.mxu0 0.0
    %190 = vmatprep.subr.mxu0 0.0
    %191 = vmatpush2.msra.mxu0 0.0
    %192 = vmatprep.subr.mxu0 0.0
    %193 = vmatpush2.msra.mxu0 0.0
    %194 = vmatprep.subr.mxu0 0.0
    %195 = vmatpush2.msra.mxu0 0.0
    %196 = vmatprep.subr.mxu0 0.0
    %197 = vmatpush2.msra.mxu0 0.0
    %198 = vmatprep.subr.mxu0 0.0
    %199 = vmatpush2.msra.mxu0 0.0
    %200 = vmatprep.subr.mxu0 0.0
    %201 = vmatpush2.msra.mxu0 0.0
    %202 = vmatprep.subr.mxu0 0.0
    %203 = vmatpush2.msra.mxu0 0.0
    %204 = vmatprep.subr.mxu0 0.0
    %205 = vmatpush2.msra.mxu0 0.0
    %206 = vmatprep.subr.mxu0 0.0
    %207 = vmatpush2.msra.mxu0 0.0
    %208 = vmatprep.subr.mxu0 0.0
    %209 = vmatpush2.msra.mxu0 0.0
    %210 = vmatprep.subr.mxu0 0.0
    %211 = vmatpush2.msra.mxu0 0.0
    %212 = vmatprep.mubr.f32.mxu0 0.0
    %213 = vmatmul.mubr.f32.gmra.mxu0 %v147
    %v214 = vpop.f32.mrf.mxu0
    %v215 = vadd.f32 1e-05, %v214
    %v216 = vpop.f32.mrf.mxu0
    %217 = vdwg.mxu0
    %v218 = vrsqrt.pop %v215
    %v219 = vmul.f32 %v146, %v218
    %v220 = vld [vmem:[#allocation9] sm:$0xff]
    %v221 = vld [vmem:[#allocation9 + $0x8] sm:$0xff]
    %v222 = vld [vmem:[#allocation9 + $0x10] sm:$0xff]
    %v223 = vld [vmem:[#allocation9 + $0x18] sm:$0xff]
    %v224 = vld [vmem:[#allocation9 + $0x20] sm:$0xff]
    %v225 = vld [vmem:[#allocation9 + $0x28] sm:$0xff]
    %v226 = vld [vmem:[#allocation9 + $0x30] sm:$0xff]
    %v227 = vld [vmem:[#allocation9 + $0x38] sm:$0xff]
    %v228 = vld [vmem:[#allocation9 + $0x40] sm:$0xff]
    %v229 = vld [vmem:[#allocation9 + $0x48] sm:$0xff]
    %v230 = vld [vmem:[#allocation9 + $0x50] sm:$0xff]
    %v231 = vld [vmem:[#allocation9 + $0x58] sm:$0xff]
    %v232 = vld [vmem:[#allocation9 + $0x60] sm:$0xff]
    %v233 = vld [vmem:[#allocation9 + $0x68] sm:$0xff]
    %v234 = vld [vmem:[#allocation9 + $0x70] sm:$0xff]
    %v235 = vld [vmem:[#allocation9 + $0x78] sm:$0xff]
    %v236 = vld [vmem:[%s4] sm:$0x1]
    %v238 = vlaneseq
    %v239 = vshrl.u32 %v238, 7
    %v240 = vsub.s32 0, %v239
    %v241 = vrot.slane %v236, %v240
    %243 = vmatprep.subr.mxu0 0.0
    %244 = vmatpush1.msra.mxu0 %v235
    %245 = vmatprep.subr.mxu0 0.0
    %246 = vmatpush1.msra.mxu0 %v234
    %247 = vmatprep.subr.mxu0 0.0
    %248 = vmatpush1.msra.mxu0 %v233
    %249 = vmatprep.subr.mxu0 0.0
    %250 = vmatpush1.msra.mxu0 %v232
    %251 = vmatprep.subr.mxu0 0.0
    %252 = vmatpush1.msra.mxu0 %v231
    %253 = vmatprep.subr.mxu0 0.0
    %254 = vmatpush1.msra.mxu0 %v230
    %255 = vmatprep.subr.mxu0 0.0
    %256 = vmatpush1.msra.mxu0 %v229
    %257 = vmatprep.subr.mxu0 0.0
    %258 = vmatpush1.msra.mxu0 %v228
    %259 = vmatprep.subr.mxu0 0.0
    %260 = vmatpush1.msra.mxu0 %v227
    %261 = vmatprep.subr.mxu0 0.0
    %262 = vmatpush1.msra.mxu0 %v226
    %263 = vmatprep.subr.mxu0 0.0
    %264 = vmatpush1.msra.mxu0 %v225
    %265 = vmatprep.subr.mxu0 0.0
    %266 = vmatpush1.msra.mxu0 %v224
    %267 = vmatprep.subr.mxu0 0.0
    %268 = vmatpush1.msra.mxu0 %v223
    %269 = vmatprep.subr.mxu0 0.0
    %270 = vmatpush1.msra.mxu0 %v222
    %271 = vmatprep.subr.mxu0 0.0
    %272 = vmatpush1.msra.mxu0 %v221
    %273 = vmatprep.subr.mxu0 0.0
    %274 = vmatpush1.msra.mxu0 %v220
    %275 = vmatprep.subr.mxu0 0.0
    %276 = vmatpush2.msra.mxu0 0.0
    %277 = vmatprep.subr.mxu0 0.0
    %278 = vmatpush2.msra.mxu0 0.0
    %279 = vmatprep.subr.mxu0 0.0
    %280 = vmatpush2.msra.mxu0 0.0
    %281 = vmatprep.subr.mxu0 0.0
    %282 = vmatpush2.msra.mxu0 0.0
    %283 = vmatprep.subr.mxu0 0.0
    %284 = vmatpush2.msra.mxu0 0.0
    %285 = vmatprep.subr.mxu0 0.0
    %286 = vmatpush2.msra.mxu0 0.0
    %287 = vmatprep.subr.mxu0 0.0
    %288 = vmatpush2.msra.mxu0 0.0
    %289 = vmatprep.subr.mxu0 0.0
    %290 = vmatpush2.msra.mxu0 0.0
    %291 = vmatprep.subr.mxu0 0.0
    %292 = vmatpush2.msra.mxu0 0.0
    %293 = vmatprep.subr.mxu0 0.0
    %294 = vmatpush2.msra.mxu0 0.0
    %295 = vmatprep.subr.mxu0 0.0
    %296 = vmatpush2.msra.mxu0 0.0
    %297 = vmatprep.subr.mxu0 0.0
    %298 = vmatpush2.msra.mxu0 0.0
    %299 = vmatprep.subr.mxu0 0.0
    %300 = vmatpush2.msra.mxu0 0.0
    %301 = vmatprep.subr.mxu0 0.0
    %302 = vmatpush2.msra.mxu0 0.0
    %303 = vmatprep.subr.mxu0 0.0
    %304 = vmatpush2.msra.mxu0 0.0
    %305 = vmatprep.subr.mxu0 0.0
    %306 = vmatpush2.msra.mxu0 0.0
    %307 = vmatprep.mubr.f32.mxu0 0.0
    %308 = vmatmul.mubr.f32.gmra.mxu0 %v219
    %v309 = vpop.f32.mrf.mxu0
    %v310 = vadd.f32 %v241, %v309
    %v311 = vpop.f32.mrf.mxu0
    %312 = vdwg.mxu0
    %v313 = vlaneseq
    %v314 = vshrl.u32 %v313, 7
    %v315 = vlaneseq
    %v316 = vand.u32 %v315, 127
    %s317 = smul.u32 0, 4
    %v318 = vstv %s317
    %v319 = vadd.s32 %v318, %v314
    %v320 = vmul.u32 %v319, 128
    %v321 = vadd.s32 %v320, %v316
    %s322 = sld [smem:[#allocation3]]
    %s323 = sshrl.u32 %s322, 16
    %s324 = sxor.u32 %s322, %s323
    %s325 = smul.u32 %s324, 2146121005
    %s326 = sshrl.u32 %s325, 15
    %s327 = sxor.u32 %s325, %s326
    %s328 = smul.u32 %s327, 2221713035
    %s329 = sshrl.u32 %s328, 16
    %s330 = sxor.u32 %s328, %s329
    %v331 = vstv %s330
    %v332 = vxor.u32 %v321, %v331
    %v333 = vshrl.u32 %v332, 16
    %v334 = vxor.u32 %v332, %v333
    %v335 = vmul.u32 %v334, 2146121005
    %v336 = vshrl.u32 %v335, 15
    %v337 = vxor.u32 %v335, %v336
    %v338 = vmul.u32 %v337, 2221713035
    %v339 = vshrl.u32 %v338, 16
    %v340 = vxor.u32 %v338, %v339
    %vm341 = vcmp.ge.u32.totalorder %v340, 429496730
    %v342 = vmul.f32 %v310, 1.1111112
    %v343 = vsel %vm341, %v342, 0.0
    %v344 = vadd.f32 %v59, %v343
    %345 = vst [vmem:[#allocation10] sm:$0xf] %v344
    // Predicated region
    $region30: #{tpu_custom_call.1} parent=1 // pred_check
      _
    $region31: #{tpu_custom_call.1} parent=1 // pred_check_branch
      %347 = sbr.rel (0) target = $region33
    $region32: #{tpu_custom_call.1} parent=1 // pred_region
      %s349 = ssub.s32 64, 64
      %350 = vsyncadd [#allocation6], %s349
      %s352 = sshll.u32 [#allocation10], 4
      %s353 = int_to_ptr.vmem [resolvable:$true] %s352
      %355 = dma.vmem_to_hbm [thread:$0]  %s353, 64, %s5, [#allocation6]
    $region33: #{tpu_custom_call.1} parent=1 // pred_fallthru
      _
    // Predicated region
    $region34: #{tpu_custom_call.1} parent=1 // pred_check
      _
    $region35: #{tpu_custom_call.1} parent=1 // pred_check_branch
      %357 = sbr.rel (0) target = $region37
    $region36: #{tpu_custom_call.1} parent=1 // pred_region
      %358 = dma.done [#allocation6], 64
    $region37: #{tpu_custom_call.1} parent=1 // pred_fallthru
      _
    %359 = vsyncpa [#allocation5], 1
    %360 = vsyncpa [#allocation8], 1
    %361 = vsyncpa [#allocation6], 1

</llo_original>
